<compile_context>
chip_gen: v7x
topology: tpu7x:2x2x1
jax: 0.10.0
libtpu: 0.0.40
codegen_flags: <defaults>
</compile_context>

<pallas_src>
import jax
import jax.numpy as jnp
from jax.experimental import pallas as pl
from jax.experimental.pallas import tpu as pltpu


_LANE = 128
_N_TMP_F32 = 12     # conservative count of live [T, C] f32 temporaries


def _codi_per_sample_kernel(y1_ref, y2_ref, lbl_ref, out_ref):
    y1 = y1_ref[...].astype(jnp.float32)          # [T, C]
    y2 = y2_ref[...].astype(jnp.float32)          # [T, C]
    lbl = lbl_ref[...]                            # [T, 1] int32

    # Softmax / log-softmax for y1 -- z1 is reused for both exp and log-prob.
    m1 = jnp.max(y1, axis=1, keepdims=True)
    z1 = y1 - m1
    e1 = jnp.exp(z1)
    s1 = jnp.sum(e1, axis=1, keepdims=True)
    log_s1 = jnp.log(s1)
    p1 = e1 * pl.reciprocal(s1)                   # exact recip (keeps 1e-5 tol)
    logp1 = z1 - log_s1

    # Same for y2.
    m2 = jnp.max(y2, axis=1, keepdims=True)
    z2 = y2 - m2
    e2 = jnp.exp(z2)
    s2 = jnp.sum(e2, axis=1, keepdims=True)
    log_s2 = jnp.log(s2)
    p2 = e2 * pl.reciprocal(s2)
    logp2 = z2 - log_s2

    # Fused JS: 0.5 * sum(mean * (2*log(mean) - logp1 - logp2)).
    mean = (p1 + p2) * 0.5
    # Guard 0 * log(0) -> NaN when both softmax probs underflow (matches the
    # "zero target contributes zero" semantics of F.kl_div).
    log_mean = jnp.log(jnp.maximum(mean, 1e-30))
    js = 0.5 * jnp.sum(mean * (2.0 * log_mean - logp1 - logp2),
                       axis=1, keepdims=True)     # [T, 1]

    # Per-sample CE: m + log(sum(exp)) - logit[label]  (== -log_softmax[label])
    col = jax.lax.broadcasted_iota(jnp.int32, y1.shape, 1)       # [T, C]
    lab1 = jnp.sum(jnp.where(col == lbl, y1, 0.0), axis=1, keepdims=True)
    lab2 = jnp.sum(jnp.where(col == lbl, y2, 0.0), axis=1, keepdims=True)
    ce1 = m1 + log_s1 - lab1                      # [T, 1]
    ce2 = m2 + log_s2 - lab2                      # [T, 1]

    # Pack the three per-sample scalars into lanes 0..2 of a [T, 128] slab,
    # transpose on the XLU (idle here; T and 128 are multiples of the native
    # tile so this lowers cleanly) and store the first 3 sublanes -> the
    # lane-dense (3, T) output block.
    lane = jax.lax.broadcasted_iota(jnp.int32, (y1.shape[0], _LANE), 1)
    slab = jnp.where(lane == 0, js,
                     jnp.where(lane == 1, ce1,
                               jnp.where(lane == 2, ce2, 0.0)))   # [T, 128]
    out_ref[...] = slab.T[0:3, :]                                 # [3, T]


def _vmem_capacity_bytes():
    """Per-core VMEM capacity (generation aware), conservative fallback."""
    try:
        return int(pltpu.get_tpu_info().vmem_capacity_bytes)
    except Exception:
        return 64 * 1024 * 1024      # v7x per-TC size; safe lower bound


def _pick_tile_n(n, c, in_itemsize, vmem_cap):
    """Batch tile (multiple of 128) sized by VMEM footprint incl. temporaries."""
    lane_c = -(-c // _LANE) * _LANE              # lane-padded class dim in VMEM
    per_row = (2 * 2 * lane_c * in_itemsize      # 2 logits inputs x 2 buffers
               + _N_TMP_F32 * lane_c * 4         # live f32 [T,C] intermediates
               + 2 * _LANE * 4                   # labels block (lane-padded) x2
               + 2 * _LANE * 4                   # pack slab + its transpose
               + 2 * 8 * 4)                      # (3->8, T) output x 2 buffers
    budget = (2 * vmem_cap) // 5                 # 40% of VMEM, headroom for Mosaic
    tile_vmem = budget // max(per_row, 1)
    tile_target = (4 << 20) // (lane_c * 4)      # ~4 MiB VMEM per logits block
    tile = min(tile_vmem, tile_target, (n // _LANE) * _LANE)
    if n >= 2 * _LANE:                           # >=2 grid steps -> both v7x TCs
        tile = min(tile, max(_LANE, ((n // 2) // _LANE) * _LANE))
    return max(_LANE, (tile // _LANE) * _LANE)


def codi_per_sample(y_1, y_2, y_noise):
    """Returns per-sample (js, ce_1, ce_2), each shape [N] float32."""
    n, c = y_1.shape
    in_itemsize = jnp.dtype(y_1.dtype).itemsize
    vmem_cap = _vmem_capacity_bytes()

    lbl = y_noise.astype(jnp.int32).reshape(n, 1)

    if n < _LANE:
        # Tiny batch: pad to one 128-row block (cheap), single grid step.
        n_rows = _LANE
        pad = ((0, n_rows - n), (0, 0))
        y_1 = jnp.pad(y_1, pad)
        y_2 = jnp.pad(y_2, pad)
        lbl = jnp.pad(lbl, pad)
        tile_n = n_rows
    else:
        # No padding: tile_n is a multiple of 128 <= n.  Pallas masks the
        # ragged final block; its garbage rows are sliced off below.
        n_rows = n
        tile_n = _pick_tile_n(n, c, in_itemsize, vmem_cap)

    grid = (pl.cdiv(n_rows, tile_n),)
    out = pl.pallas_call(
        _codi_per_sample_kernel,
        out_shape=jax.ShapeDtypeStruct((3, n_rows), jnp.float32),
        grid=grid,
        in_specs=[
            pl.BlockSpec((tile_n, c), lambda i: (i, 0)),
            pl.BlockSpec((tile_n, c), lambda i: (i, 0)),
            pl.BlockSpec((tile_n, 1), lambda i: (i, 0)),
        ],
        out_specs=pl.BlockSpec((3, tile_n), lambda i: (0, i)),
        compiler_params=pltpu.CompilerParams(
            dimension_semantics=("parallel",),     # megacore sharding on v7x
            vmem_limit_bytes=(vmem_cap * 9) // 10,
        ),
    )(y_1, y_2, lbl)
    # TODO(synk): for vocab-scale C (>= ~8k) add a second ("arbitrary") grid
    # axis over C with an online-softmax carry so tiles still fit v7x VMEM.
    # TODO(synk): for C < 128 a further (compute-side) win is folding 128//C
    # samples per lane row to recover lane occupancy; kernel is HBM-bound here.

    return out[0, :n], out[1, :n], out[2, :n]


def codi_loss_forward(y_1, y_2, y_noise, forget_rate, ind, noise_or_not,
                      co_lambda=0.1):
    """Mirrors CoDiLoss.forward. forget_rate is a Python float (static)."""
    n = y_1.shape[0]
    js, ce1, ce2 = codi_per_sample(y_1, y_2, y_noise)

    # loss_i = CE_i - co_lambda * JS (JS is "detached"; forward only here)
    loss_1 = ce1 - co_lambda * js
    loss_2 = ce2 - co_lambda * js

    ind_1_sorted = jnp.argsort(loss_1)
    ind_2_sorted = jnp.argsort(loss_2)

    remember_rate = 1.0 - forget_rate
    num_remember = int(remember_rate * n)
    if num_remember == 0:
        ind_1_update = ind_1_sorted
        ind_2_update = ind_2_sorted
        num_remember = n
    else:
        ind_1_update = ind_1_sorted[:num_remember]
        ind_2_update = ind_2_sorted[:num_remember]

    pure_ratio_1 = jnp.sum(
        noise_or_not[ind[ind_1_sorted[:num_remember]]]) / float(num_remember)
    pure_ratio_2 = jnp.sum(
        noise_or_not[ind[ind_2_sorted[:num_remember]]]) / float(num_remember)

    # F.cross_entropy(y_1[ind_2_update], y_noise[ind_2_update]) with 'mean'
    # reduction == mean of the per-sample CE over the selected subset.
    loss_1_update = jnp.mean(ce1[ind_2_update])
    loss_2_update = jnp.mean(ce2[ind_1_update])

    return (loss_1_update, loss_2_update, pure_ratio_1, pure_ratio_2, 0, 0, 0, 0)


def _reference(y_1, y_2, y_noise, forget_rate, ind, noise_or_not, co_lambda=0.1):
    """Pure-JAX reference for a sanity check."""
    logp1 = jax.nn.log_softmax(y_1, axis=1)
    logp2 = jax.nn.log_softmax(y_2, axis=1)
    p1, p2 = jnp.exp(logp1), jnp.exp(logp2)
    m = (p1 + p2) / 2
    js = jnp.sum((m * (jnp.log(m) - logp1) + m * (jnp.log(m) - logp2)) / 2, axis=1)
    ce1 = -jnp.take_along_axis(logp1, y_noise[:, None], axis=1)[:, 0]
    ce2 = -jnp.take_along_axis(logp2, y_noise[:, None], axis=1)[:, 0]
    n = y_1.shape[0]
    l1 = ce1 - co_lambda * js
    l2 = ce2 - co_lambda * js
    i1 = jnp.argsort(l1)
    i2 = jnp.argsort(l2)
    num = max(int((1 - forget_rate) * n), 1)
    pr1 = jnp.sum(noise_or_not[ind[i1[:num]]]) / float(num)
    pr2 = jnp.sum(noise_or_not[ind[i2[:num]]]) / float(num)
    return (jnp.mean(ce1[i2[:num]]), jnp.mean(ce2[i1[:num]]), pr1, pr2)


if __name__ == "__main__":
    key = jax.random.PRNGKey(0)
    k1, k2, k3, k4 = jax.random.split(key, 4)

    # --- Small-shape check (single-block path) -------------------------------
    N, C = 8, 32          # batch, num classes
    DATASET = 64          # size of noise_or_not table

    y_1 = jax.random.normal(k1, (N, C), dtype=jnp.float32)
    y_2 = jax.random.normal(k2, (N, C), dtype=jnp.float32)
    y_noise = jax.random.randint(k3, (N,), 0, C, dtype=jnp.int32)
    ind = jnp.arange(N, dtype=jnp.int32) + 3            # indices into dataset
    noise_or_not = (jax.random.uniform(k4, (DATASET,)) > 0.5).astype(jnp.float32)
    forget_rate = 0.25

    out = codi_loss_forward(y_1, y_2, y_noise, forget_rate, ind, noise_or_not)
    out = jax.block_until_ready(out)
    ref = _reference(y_1, y_2, y_noise, forget_rate, ind, noise_or_not)
    for got, want in zip(out[:4], ref):
        assert jnp.allclose(got, want, atol=1e-5, rtol=1e-5), (got, want)

    # --- Ragged multi-block check (grid path, partial final block) -----------
    k5, k6, k7, k8 = jax.random.split(jax.random.PRNGKey(1), 4)
    N2, C2 = 300, 16
    y_1b = jax.random.normal(k5, (N2, C2), dtype=jnp.float32)
    y_2b = jax.random.normal(k6, (N2, C2), dtype=jnp.float32)
    y_nb = jax.random.randint(k7, (N2,), 0, C2, dtype=jnp.int32)
    ind_b = jnp.arange(N2, dtype=jnp.int32)
    non_b = (jax.random.uniform(k8, (N2,)) > 0.5).astype(jnp.float32)

    out_b = codi_loss_forward(y_1b, y_2b, y_nb, 0.2, ind_b, non_b)
    out_b = jax.block_until_ready(out_b)
    ref_b = _reference(y_1b, y_2b, y_nb, 0.2, ind_b, non_b)
    for got, want in zip(out_b[:4], ref_b):
        assert jnp.allclose(got, want, atol=1e-4, rtol=1e-4), (got, want)

    print("KERNEL_OK")
</pallas_src>

<mosaic_0001>
module attributes {stable_mosaic.version = 11 : i64} {
  func.func @_codi_per_sample_kernel(%arg0: i32, %arg1: memref<128x32xf32, #tpu.memory_space<vmem>>, %arg2: memref<128x32xf32, #tpu.memory_space<vmem>>, %arg3: memref<128x1xi32, #tpu.memory_space<vmem>>, %arg4: memref<3x128xf32, #tpu.memory_space<vmem>>) attributes {dimension_semantics = [#tpu.dimension_semantics<parallel>], iteration_bounds = array<i64: 1>, scalar_prefetch = 0 : i64, scratch_operands = 0 : i64, tpu.core_type = #tpu.core_type<tc>, window_params = [{transform_indices = @transform_0, window_bounds = array<i64: 128, 32>}, {transform_indices = @transform_1, window_bounds = array<i64: 128, 32>}, {transform_indices = @transform_2, window_bounds = array<i64: 128, 1>}, {transform_indices = @transform_3, window_bounds = array<i64: 3, 128>}]} {
    %c0 = arith.constant 0 : index
    %c0_0 = arith.constant 0 : index
    %0 = vector.load %arg1[%c0, %c0_0] : memref<128x32xf32, #tpu.memory_space<vmem>>, vector<128x32xf32>
    %c0_1 = arith.constant 0 : index
    %c0_2 = arith.constant 0 : index
    %1 = vector.load %arg2[%c0_1, %c0_2] : memref<128x32xf32, #tpu.memory_space<vmem>>, vector<128x32xf32>
    %c0_3 = arith.constant 0 : index
    %c0_4 = arith.constant 0 : index
    %2 = vector.load %arg3[%c0_3, %c0_4] : memref<128x1xi32, #tpu.memory_space<vmem>>, vector<128x1xi32>
    %cst = arith.constant dense<0xFF800000> : vector<128xf32>
    %3 = vector.multi_reduction <maximumf>, %0, %cst [1] : vector<128x32xf32> to vector<128xf32>
    %4 = vector.shape_cast %3 : vector<128xf32> to vector<128x1xf32>
    %5 = vector.broadcast %4 : vector<128x1xf32> to vector<128x32xf32>
    %6 = arith.subf %0, %5 : vector<128x32xf32>
    %7 = math.exp %6 : vector<128x32xf32>
    %cst_5 = arith.constant dense<0.000000e+00> : vector<128xf32>
    %8 = vector.multi_reduction <add>, %7, %cst_5 [1] : vector<128x32xf32> to vector<128xf32>
    %9 = vector.shape_cast %8 : vector<128xf32> to vector<128x1xf32>
    %10 = math.log %9 : vector<128x1xf32>
    %11 = tpu.reciprocal %9 : vector<128x1xf32> -> vector<128x1xf32>
    %12 = vector.broadcast %11 : vector<128x1xf32> to vector<128x32xf32>
    %13 = arith.mulf %7, %12 : vector<128x32xf32>
    %14 = vector.broadcast %10 : vector<128x1xf32> to vector<128x32xf32>
    %15 = arith.subf %6, %14 : vector<128x32xf32>
    %cst_6 = arith.constant dense<0xFF800000> : vector<128xf32>
    %16 = vector.multi_reduction <maximumf>, %1, %cst_6 [1] : vector<128x32xf32> to vector<128xf32>
    %17 = vector.shape_cast %16 : vector<128xf32> to vector<128x1xf32>
    %18 = vector.broadcast %17 : vector<128x1xf32> to vector<128x32xf32>
    %19 = arith.subf %1, %18 : vector<128x32xf32>
    %20 = math.exp %19 : vector<128x32xf32>
    %cst_7 = arith.constant dense<0.000000e+00> : vector<128xf32>
    %21 = vector.multi_reduction <add>, %20, %cst_7 [1] : vector<128x32xf32> to vector<128xf32>
    %22 = vector.shape_cast %21 : vector<128xf32> to vector<128x1xf32>
    %23 = math.log %22 : vector<128x1xf32>
    %24 = tpu.reciprocal %22 : vector<128x1xf32> -> vector<128x1xf32>
    %25 = vector.broadcast %24 : vector<128x1xf32> to vector<128x32xf32>
    %26 = arith.mulf %20, %25 : vector<128x32xf32>
    %27 = vector.broadcast %23 : vector<128x1xf32> to vector<128x32xf32>
    %28 = arith.subf %19, %27 : vector<128x32xf32>
    %29 = arith.addf %13, %26 : vector<128x32xf32>
    %cst_8 = arith.constant 5.000000e-01 : f32
    %30 = vector.broadcast %cst_8 : f32 to vector<128x32xf32>
    %31 = arith.mulf %29, %30 : vector<128x32xf32>
    %cst_9 = arith.constant 1.000000e-30 : f32
    %32 = vector.broadcast %cst_9 : f32 to vector<128x32xf32>
    %33 = arith.maximumf %31, %32 : vector<128x32xf32>
    %34 = math.log %33 : vector<128x32xf32>
    %cst_10 = arith.constant 2.000000e+00 : f32
    %35 = vector.broadcast %cst_10 : f32 to vector<128x32xf32>
    %36 = arith.mulf %35, %34 : vector<128x32xf32>
    %37 = arith.subf %36, %15 : vector<128x32xf32>
    %38 = arith.subf %37, %28 : vector<128x32xf32>
    %39 = arith.mulf %31, %38 : vector<128x32xf32>
    %cst_11 = arith.constant dense<0.000000e+00> : vector<128xf32>
    %40 = vector.multi_reduction <add>, %39, %cst_11 [1] : vector<128x32xf32> to vector<128xf32>
    %41 = vector.shape_cast %40 : vector<128xf32> to vector<128x1xf32>
    %cst_12 = arith.constant 5.000000e-01 : f32
    %42 = vector.broadcast %cst_12 : f32 to vector<128x1xf32>
    %43 = arith.mulf %42, %41 : vector<128x1xf32>
    %44 = tpu.iota {dimensions = array<i32: 1>} : vector<128x32xi32>
    %45 = vector.broadcast %2 : vector<128x1xi32> to vector<128x32xi32>
    %46 = arith.cmpi eq, %44, %45 : vector<128x32xi32>
    %cst_13 = arith.constant 0.000000e+00 : f32
    %47 = vector.broadcast %cst_13 : f32 to vector<128x32xf32>
    %48 = arith.select %46, %0, %47 : vector<128x32xi1>, vector<128x32xf32>
    %cst_14 = arith.constant dense<0.000000e+00> : vector<128xf32>
    %49 = vector.multi_reduction <add>, %48, %cst_14 [1] : vector<128x32xf32> to vector<128xf32>
    %50 = vector.shape_cast %49 : vector<128xf32> to vector<128x1xf32>
    %51 = vector.broadcast %2 : vector<128x1xi32> to vector<128x32xi32>
    %52 = arith.cmpi eq, %44, %51 : vector<128x32xi32>
    %cst_15 = arith.constant 0.000000e+00 : f32
    %53 = vector.broadcast %cst_15 : f32 to vector<128x32xf32>
    %54 = arith.select %52, %1, %53 : vector<128x32xi1>, vector<128x32xf32>
    %cst_16 = arith.constant dense<0.000000e+00> : vector<128xf32>
    %55 = vector.multi_reduction <add>, %54, %cst_16 [1] : vector<128x32xf32> to vector<128xf32>
    %56 = vector.shape_cast %55 : vector<128xf32> to vector<128x1xf32>
    %57 = arith.addf %4, %10 : vector<128x1xf32>
    %58 = arith.subf %57, %50 : vector<128x1xf32>
    %59 = arith.addf %17, %23 : vector<128x1xf32>
    %60 = arith.subf %59, %56 : vector<128x1xf32>
    %61 = tpu.iota {dimensions = array<i32: 1>} : vector<128x128xi32>
    %c0_i32 = arith.constant 0 : i32
    %62 = vector.broadcast %c0_i32 : i32 to vector<128x128xi32>
    %63 = arith.cmpi eq, %61, %62 : vector<128x128xi32>
    %c1_i32 = arith.constant 1 : i32
    %64 = vector.broadcast %c1_i32 : i32 to vector<128x128xi32>
    %65 = arith.cmpi eq, %61, %64 : vector<128x128xi32>
    %c2_i32 = arith.constant 2 : i32
    %66 = vector.broadcast %c2_i32 : i32 to vector<128x128xi32>
    %67 = arith.cmpi eq, %61, %66 : vector<128x128xi32>
    %cst_17 = arith.constant 0.000000e+00 : f32
    %68 = vector.shape_cast %60 : vector<128x1xf32> to vector<128x1xf32>
    %69 = vector.broadcast %68 : vector<128x1xf32> to vector<128x128xf32>
    %70 = vector.broadcast %cst_17 : f32 to vector<128x128xf32>
    %71 = arith.select %67, %69, %70 : vector<128x128xi1>, vector<128x128xf32>
    %72 = vector.shape_cast %58 : vector<128x1xf32> to vector<128x1xf32>
    %73 = vector.broadcast %72 : vector<128x1xf32> to vector<128x128xf32>
    %74 = arith.select %65, %73, %71 : vector<128x128xi1>, vector<128x128xf32>
    %75 = vector.shape_cast %43 : vector<128x1xf32> to vector<128x1xf32>
    %76 = vector.broadcast %75 : vector<128x1xf32> to vector<128x128xf32>
    %77 = arith.select %63, %76, %74 : vector<128x128xi1>, vector<128x128xf32>
    %78 = tpu.transpose %77, [1, 0] : vector<128x128xf32> -> vector<128x128xf32>
    %79 = vector.extract_strided_slice %78 {offsets = [0, 0], sizes = [3, 128], strides = [1, 1]} : vector<128x128xf32> to vector<3x128xf32>
    %c0_18 = arith.constant 0 : index
    %c0_19 = arith.constant 0 : index
    %80 = vector.load %arg4[%c0_18, %c0_19] : memref<3x128xf32, #tpu.memory_space<vmem>>, vector<3x128xf32>
    tpu.vector_store %arg4[%c0_18, %c0_19], %79 {strides = array<i32>} : memref<3x128xf32, #tpu.memory_space<vmem>>, vector<3x128xf32>,
    return
  }
  func.func @transform_0(%arg0: i32) -> (i32, i32) {
    %c0_i32 = arith.constant 0 : i32
    %c0_i32_0 = arith.constant 0 : i32
    return %arg0, %c0_i32 : i32, i32
  }
  func.func @transform_1(%arg0: i32) -> (i32, i32) {
    %c0_i32 = arith.constant 0 : i32
    %c0_i32_0 = arith.constant 0 : i32
    return %arg0, %c0_i32 : i32, i32
  }
  func.func @transform_2(%arg0: i32) -> (i32, i32) {
    %c0_i32 = arith.constant 0 : i32
    %c0_i32_0 = arith.constant 0 : i32
    return %arg0, %c0_i32 : i32, i32
  }
  func.func @transform_3(%arg0: i32) -> (i32, i32) {
    %c0_i32 = arith.constant 0 : i32
    %c0_i32_0 = arith.constant 0 : i32
    return %c0_i32, %arg0 : i32, i32
  }
}

</mosaic_0001>

<llo_original>
// kernel: tpu_custom_call.1
$region0: #{tpu_custom_call.1}
  #allocation0 [shape = 'u32[]', space=smem, size = 0x4, offset = 0x4, fixed_abs, tag = 'smem constant byte address 0x4 - core index']
  #allocation1 [shape = 'u32[144,128]{1,0:T(1,128)}', space=vmem, size = 0x12000, scoped, tag = 'internal scratch']
  %s0 = inlined_call_operand.vmem [shape: f32[128,32], index: 0, kind: input, shape index: {}]
  %s1 = inlined_call_operand.vmem [shape: f32[128,32], index: 1, kind: input, shape index: {}]
  %s2 = inlined_call_operand.vmem [shape: s32[128,1], index: 2, kind: input, shape index: {}]
  %s3 = inlined_call_operand.hbm [shape: f32[3,128], index: 3, kind: output, shape index: {}]
  %s4 = sld [smem:[#allocation0]]
  $region22: #{tpu_custom_call.1} parent=0
    _
  %s6 = ssub.s32 1, %s4
  %s7 = scalar_select 0, %s6, %s4
  $region1: #{tpu_custom_call.1} parent=0
    #allocation2 [shape = 'u8[2048]{0}', space=vmem, size = 0x800, scoped, tag = 'output window, operand 0, single buffered']
    #allocation3 [shape = 's32[1]{0}', space=sflag, size = 0x4, scoped, tag = 'scoped memory for tpu_custom_call.1']
    %8 = vsyncpa [#allocation3], 0
    // Predicated region
    $region2: #{tpu_custom_call.1} parent=1 // pred_check
      _
    $region3: #{tpu_custom_call.1} parent=1 // pred_check_branch
      %10 = sbr.rel (0) target = $region5
    $region4: #{tpu_custom_call.1} parent=1 // pred_region
      _
    $region5: #{tpu_custom_call.1} parent=1 // pred_fallthru
      _
    // Predicated region
    $region6: #{tpu_custom_call.1} parent=1 // pred_check
      _
    $region7: #{tpu_custom_call.1} parent=1 // pred_check_branch
      %12 = sbr.rel (0) target = $region9
    $region8: #{tpu_custom_call.1} parent=1 // pred_region
      _
    $region9: #{tpu_custom_call.1} parent=1 // pred_fallthru
      _
    // Predicated region
    $region10: #{tpu_custom_call.1} parent=1 // pred_check
      _
    $region11: #{tpu_custom_call.1} parent=1 // pred_check_branch
      %14 = sbr.rel (0) target = $region13
    $region12: #{tpu_custom_call.1} parent=1 // pred_region
      _
    $region13: #{tpu_custom_call.1} parent=1 // pred_fallthru
      _
    %v15 = vld [vmem:[%s0] sm:$0xff]
    %v16 = vld [vmem:[%s0 + $0x8] sm:$0xff]
    %v17 = vld [vmem:[%s0 + $0x10] sm:$0xff]
    %v18 = vld [vmem:[%s0 + $0x18] sm:$0xff]
    %v19 = vld [vmem:[%s0 + $0x20] sm:$0xff]
    %v20 = vld [vmem:[%s0 + $0x28] sm:$0xff]
    %v21 = vld [vmem:[%s0 + $0x30] sm:$0xff]
    %v22 = vld [vmem:[%s0 + $0x38] sm:$0xff]
    %v23 = vld [vmem:[%s0 + $0x40] sm:$0xff]
    %v24 = vld [vmem:[%s0 + $0x48] sm:$0xff]
    %v25 = vld [vmem:[%s0 + $0x50] sm:$0xff]
    %v26 = vld [vmem:[%s0 + $0x58] sm:$0xff]
    %v27 = vld [vmem:[%s0 + $0x60] sm:$0xff]
    %v28 = vld [vmem:[%s0 + $0x68] sm:$0xff]
    %v29 = vld [vmem:[%s0 + $0x70] sm:$0xff]
    %v30 = vld [vmem:[%s0 + $0x78] sm:$0xff]
    %v31 = vld [vmem:[%s1] sm:$0xff]
    %v32 = vld [vmem:[%s1 + $0x8] sm:$0xff]
    %v33 = vld [vmem:[%s1 + $0x10] sm:$0xff]
    %v34 = vld [vmem:[%s1 + $0x18] sm:$0xff]
    %v35 = vld [vmem:[%s1 + $0x20] sm:$0xff]
    %v36 = vld [vmem:[%s1 + $0x28] sm:$0xff]
    %v37 = vld [vmem:[%s1 + $0x30] sm:$0xff]
    %v38 = vld [vmem:[%s1 + $0x38] sm:$0xff]
    %v39 = vld [vmem:[%s1 + $0x40] sm:$0xff]
    %v40 = vld [vmem:[%s1 + $0x48] sm:$0xff]
    %v41 = vld [vmem:[%s1 + $0x50] sm:$0xff]
    %v42 = vld [vmem:[%s1 + $0x58] sm:$0xff]
    %v43 = vld [vmem:[%s1 + $0x60] sm:$0xff]
    %v44 = vld [vmem:[%s1 + $0x68] sm:$0xff]
    %v45 = vld [vmem:[%s1 + $0x70] sm:$0xff]
    %v46 = vld [vmem:[%s1 + $0x78] sm:$0xff]
    %v47 = vld [vmem:[%s2] sm:$0xff]
    %v48 = vld [vmem:[%s2 + $0x8] sm:$0xff]
    %v49 = vld [vmem:[%s2 + $0x10] sm:$0xff]
    %v50 = vld [vmem:[%s2 + $0x18] sm:$0xff]
    %v51 = vld [vmem:[%s2 + $0x20] sm:$0xff]
    %v52 = vld [vmem:[%s2 + $0x28] sm:$0xff]
    %v53 = vld [vmem:[%s2 + $0x30] sm:$0xff]
    %v54 = vld [vmem:[%s2 + $0x38] sm:$0xff]
    %v55 = vld [vmem:[%s2 + $0x40] sm:$0xff]
    %v56 = vld [vmem:[%s2 + $0x48] sm:$0xff]
    %v57 = vld [vmem:[%s2 + $0x50] sm:$0xff]
    %v58 = vld [vmem:[%s2 + $0x58] sm:$0xff]
    %v59 = vld [vmem:[%s2 + $0x60] sm:$0xff]
    %v60 = vld [vmem:[%s2 + $0x68] sm:$0xff]
    %v61 = vld [vmem:[%s2 + $0x70] sm:$0xff]
    %v62 = vld [vmem:[%s2 + $0x78] sm:$0xff]
    %vm63 = vcmask 261120
    %v64 = vsel %vm63, %v15, -inf
    %65 = vmax.xlane.f32.xlu0 %v64
    %v66 = vpop.xlane.xlu0 %65
    %v67 = vsel %vm63, %v16, -inf
    %68 = vmax.xlane.f32.xlu0 %v67
    %v69 = vpop.xlane.xlu0 %68
    %v70 = vsel %vm63, %v17, -inf
    %71 = vmax.xlane.f32.xlu0 %v70
    %v72 = vpop.xlane.xlu0 %71
    %v73 = vsel %vm63, %v18, -inf
    %74 = vmax.xlane.f32.xlu0 %v73
    %v75 = vpop.xlane.xlu0 %74
    %v76 = vsel %vm63, %v19, -inf
    %77 = vmax.xlane.f32.xlu0 %v76
    %v78 = vpop.xlane.xlu0 %77
    %v79 = vsel %vm63, %v20, -inf
    %80 = vmax.xlane.f32.xlu0 %v79
    %v81 = vpop.xlane.xlu0 %80
    %v82 = vsel %vm63, %v21, -inf
    %83 = vmax.xlane.f32.xlu0 %v82
    %v84 = vpop.xlane.xlu0 %83
    %v85 = vsel %vm63, %v22, -inf
    %86 = vmax.xlane.f32.xlu0 %v85
    %v87 = vpop.xlane.xlu0 %86
    %v88 = vsel %vm63, %v23, -inf
    %89 = vmax.xlane.f32.xlu0 %v88
    %v90 = vpop.xlane.xlu0 %89
    %v91 = vsel %vm63, %v24, -inf
    %92 = vmax.xlane.f32.xlu0 %v91
    %v93 = vpop.xlane.xlu0 %92
    %v94 = vsel %vm63, %v25, -inf
    %95 = vmax.xlane.f32.xlu0 %v94
    %v96 = vpop.xlane.xlu0 %95
    %v97 = vsel %vm63, %v26, -inf
    %98 = vmax.xlane.f32.xlu0 %v97
    %v99 = vpop.xlane.xlu0 %98
    %v100 = vsel %vm63, %v27, -inf
    %101 = vmax.xlane.f32.xlu0 %v100
    %v102 = vpop.xlane.xlu0 %101
    %v103 = vsel %vm63, %v28, -inf
    %104 = vmax.xlane.f32.xlu0 %v103
    %v105 = vpop.xlane.xlu0 %104
    %v106 = vsel %vm63, %v29, -inf
    %107 = vmax.xlane.f32.xlu0 %v106
    %v108 = vpop.xlane.xlu0 %107
    %v109 = vsel %vm63, %v30, -inf
    %110 = vmax.xlane.f32.xlu0 %v109
    %v111 = vpop.xlane.xlu0 %110
    %v112 = vsub.f32 %v15, %v66
    %v113 = vsub.f32 %v16, %v69
    %v114 = vsub.f32 %v17, %v72
    %v115 = vsub.f32 %v18, %v75
    %v116 = vsub.f32 %v19, %v78
    %v117 = vsub.f32 %v20, %v81
    %v118 = vsub.f32 %v21, %v84
    %v119 = vsub.f32 %v22, %v87
    %v120 = vsub.f32 %v23, %v90
    %v121 = vsub.f32 %v24, %v93
    %v122 = vsub.f32 %v25, %v96
    %v123 = vsub.f32 %v26, %v99
    %v124 = vsub.f32 %v27, %v102
    %v125 = vsub.f32 %v28, %v105
    %v126 = vsub.f32 %v29, %v108
    %v127 = vsub.f32 %v30, %v111
    %v128 = vmul.f32 %v112, 1.442695
    %v129 = vpow.pop %v128
    %v130 = vmul.f32 %v113, 1.442695
    %v131 = vpow.pop %v130
    %v132 = vmul.f32 %v114, 1.442695
    %v133 = vpow.pop %v132
    %v134 = vmul.f32 %v115, 1.442695
    %v135 = vpow.pop %v134
    %v136 = vmul.f32 %v116, 1.442695
    %v137 = vpow.pop %v136
    %v138 = vmul.f32 %v117, 1.442695
    %v139 = vpow.pop %v138
    %v140 = vmul.f32 %v118, 1.442695
    %v141 = vpow.pop %v140
    %v142 = vmul.f32 %v119, 1.442695
    %v143 = vpow.pop %v142
    %v144 = vmul.f32 %v120, 1.442695
    %v145 = vpow.pop %v144
    %v146 = vmul.f32 %v121, 1.442695
    %v147 = vpow.pop %v146
    %v148 = vmul.f32 %v122, 1.442695
    %v149 = vpow.pop %v148
    %v150 = vmul.f32 %v123, 1.442695
    %v151 = vpow.pop %v150
    %v152 = vmul.f32 %v124, 1.442695
    %v153 = vpow.pop %v152
    %v154 = vmul.f32 %v125, 1.442695
    %v155 = vpow.pop %v154
    %v156 = vmul.f32 %v126, 1.442695
    %v157 = vpow.pop %v156
    %v158 = vmul.f32 %v127, 1.442695
    %v159 = vpow.pop %v158
    %v160 = vsel %vm63, %v129, 0.0
    %161 = vadd.xlane.f32.xlu0 %v160
    %v162 = vpop.xlane.xlu0 %161
    %v163 = vsel %vm63, %v131, 0.0
    %164 = vadd.xlane.f32.xlu0 %v163
    %v165 = vpop.xlane.xlu0 %164
    %v166 = vsel %vm63, %v133, 0.0
    %167 = vadd.xlane.f32.xlu0 %v166
    %v168 = vpop.xlane.xlu0 %167
    %v169 = vsel %vm63, %v135, 0.0
    %170 = vadd.xlane.f32.xlu0 %v169
    %v171 = vpop.xlane.xlu0 %170
    %v172 = vsel %vm63, %v137, 0.0
    %173 = vadd.xlane.f32.xlu0 %v172
    %v174 = vpop.xlane.xlu0 %173
    %v175 = vsel %vm63, %v139, 0.0
    %176 = vadd.xlane.f32.xlu0 %v175
    %v177 = vpop.xlane.xlu0 %176
    %v178 = vsel %vm63, %v141, 0.0
    %179 = vadd.xlane.f32.xlu0 %v178
    %v180 = vpop.xlane.xlu0 %179
    %v181 = vsel %vm63, %v143, 0.0
    %182 = vadd.xlane.f32.xlu0 %v181
    %v183 = vpop.xlane.xlu0 %182
    %v184 = vsel %vm63, %v145, 0.0
    %185 = vadd.xlane.f32.xlu0 %v184
    %v186 = vpop.xlane.xlu0 %185
    %v187 = vsel %vm63, %v147, 0.0
    %188 = vadd.xlane.f32.xlu0 %v187
    %v189 = vpop.xlane.xlu0 %188
    %v190 = vsel %vm63, %v149, 0.0
    %191 = vadd.xlane.f32.xlu0 %v190
    %v192 = vpop.xlane.xlu0 %191
    %v193 = vsel %vm63, %v151, 0.0
    %194 = vadd.xlane.f32.xlu0 %v193
    %v195 = vpop.xlane.xlu0 %194
    %v196 = vsel %vm63, %v153, 0.0
    %197 = vadd.xlane.f32.xlu0 %v196
    %v198 = vpop.xlane.xlu0 %197
    %v199 = vsel %vm63, %v155, 0.0
    %200 = vadd.xlane.f32.xlu0 %v199
    %v201 = vpop.xlane.xlu0 %200
    %v202 = vsel %vm63, %v157, 0.0
    %203 = vadd.xlane.f32.xlu0 %v202
    %v204 = vpop.xlane.xlu0 %203
    %v205 = vsel %vm63, %v159, 0.0
    %206 = vadd.xlane.f32.xlu0 %v205
    %v207 = vpop.xlane.xlu0 %206
    %v208 = vlog2.pop %v162
    %v209 = vmul.f32 %v208, 0.6931472
    %v210 = vlog2.pop %v165
    %v211 = vmul.f32 %v210, 0.6931472
    %v212 = vlog2.pop %v168
    %v213 = vmul.f32 %v212, 0.6931472
    %v214 = vlog2.pop %v171
    %v215 = vmul.f32 %v214, 0.6931472
    %v216 = vlog2.pop %v174
    %v217 = vmul.f32 %v216, 0.6931472
    %v218 = vlog2.pop %v177
    %v219 = vmul.f32 %v218, 0.6931472
    %v220 = vlog2.pop %v180
    %v221 = vmul.f32 %v220, 0.6931472
    %v222 = vlog2.pop %v183
    %v223 = vmul.f32 %v222, 0.6931472
    %v224 = vlog2.pop %v186
    %v225 = vmul.f32 %v224, 0.6931472
    %v226 = vlog2.pop %v189
    %v227 = vmul.f32 %v226, 0.6931472
    %v228 = vlog2.pop %v192
    %v229 = vmul.f32 %v228, 0.6931472
    %v230 = vlog2.pop %v195
    %v231 = vmul.f32 %v230, 0.6931472
    %v232 = vlog2.pop %v198
    %v233 = vmul.f32 %v232, 0.6931472
    %v234 = vlog2.pop %v201
    %v235 = vmul.f32 %v234, 0.6931472
    %v236 = vlog2.pop %v204
    %v237 = vmul.f32 %v236, 0.6931472
    %v238 = vlog2.pop %v207
    %v239 = vmul.f32 %v238, 0.6931472
    %v240 = vrcp.pop %v162
    %v241 = vrcp.pop %v165
    %v242 = vrcp.pop %v168
    %v243 = vrcp.pop %v171
    %v244 = vrcp.pop %v174
    %v245 = vrcp.pop %v177
    %v246 = vrcp.pop %v180
    %v247 = vrcp.pop %v183
    %v248 = vrcp.pop %v186
    %v249 = vrcp.pop %v189
    %v250 = vrcp.pop %v192
    %v251 = vrcp.pop %v195
    %v252 = vrcp.pop %v198
    %v253 = vrcp.pop %v201
    %v254 = vrcp.pop %v204
    %v255 = vrcp.pop %v207
    %v256 = vmul.f32 %v129, %v240
    %v257 = vmul.f32 %v131, %v241
    %v258 = vmul.f32 %v133, %v242
    %v259 = vmul.f32 %v135, %v243
    %v260 = vmul.f32 %v137, %v244
    %v261 = vmul.f32 %v139, %v245
    %v262 = vmul.f32 %v141, %v246
    %v263 = vmul.f32 %v143, %v247
    %v264 = vmul.f32 %v145, %v248
    %v265 = vmul.f32 %v147, %v249
    %v266 = vmul.f32 %v149, %v250
    %v267 = vmul.f32 %v151, %v251
    %v268 = vmul.f32 %v153, %v252
    %v269 = vmul.f32 %v155, %v253
    %v270 = vmul.f32 %v157, %v254
    %v271 = vmul.f32 %v159, %v255
    %v272 = vsub.f32 %v112, %v209
    %v273 = vsub.f32 %v113, %v211
    %v274 = vsub.f32 %v114, %v213
    %v275 = vsub.f32 %v115, %v215
    %v276 = vsub.f32 %v116, %v217
    %v277 = vsub.f32 %v117, %v219
    %v278 = vsub.f32 %v118, %v221
    %v279 = vsub.f32 %v119, %v223
    %v280 = vsub.f32 %v120, %v225
    %v281 = vsub.f32 %v121, %v227
    %v282 = vsub.f32 %v122, %v229
    %v283 = vsub.f32 %v123, %v231
    %v284 = vsub.f32 %v124, %v233
    %v285 = vsub.f32 %v125, %v235
    %v286 = vsub.f32 %v126, %v237
    %v287 = vsub.f32 %v127, %v239
    %v288 = vsel %vm63, %v31, -inf
    %289 = vmax.xlane.f32.xlu0 %v288
    %v290 = vpop.xlane.xlu0 %289
    %v291 = vsel %vm63, %v32, -inf
    %292 = vmax.xlane.f32.xlu0 %v291
    %v293 = vpop.xlane.xlu0 %292
    %v294 = vsel %vm63, %v33, -inf
    %295 = vmax.xlane.f32.xlu0 %v294
    %v296 = vpop.xlane.xlu0 %295
    %v297 = vsel %vm63, %v34, -inf
    %298 = vmax.xlane.f32.xlu0 %v297
    %v299 = vpop.xlane.xlu0 %298
    %v300 = vsel %vm63, %v35, -inf
    %301 = vmax.xlane.f32.xlu0 %v300
    %v302 = vpop.xlane.xlu0 %301
    %v303 = vsel %vm63, %v36, -inf
    %304 = vmax.xlane.f32.xlu0 %v303
    %v305 = vpop.xlane.xlu0 %304
    %v306 = vsel %vm63, %v37, -inf
    %307 = vmax.xlane.f32.xlu0 %v306
    %v308 = vpop.xlane.xlu0 %307
    %v309 = vsel %vm63, %v38, -inf
    %310 = vmax.xlane.f32.xlu0 %v309
    %v311 = vpop.xlane.xlu0 %310
    %v312 = vsel %vm63, %v39, -inf
    %313 = vmax.xlane.f32.xlu0 %v312
    %v314 = vpop.xlane.xlu0 %313
    %v315 = vsel %vm63, %v40, -inf
    %316 = vmax.xlane.f32.xlu0 %v315
    %v317 = vpop.xlane.xlu0 %316
    %v318 = vsel %vm63, %v41, -inf
    %319 = vmax.xlane.f32.xlu0 %v318
    %v320 = vpop.xlane.xlu0 %319
    %v321 = vsel %vm63, %v42, -inf
    %322 = vmax.xlane.f32.xlu0 %v321
    %v323 = vpop.xlane.xlu0 %322
    %v324 = vsel %vm63, %v43, -inf
    %325 = vmax.xlane.f32.xlu0 %v324
    %v326 = vpop.xlane.xlu0 %325
    %v327 = vsel %vm63, %v44, -inf
    %328 = vmax.xlane.f32.xlu0 %v327
    %v329 = vpop.xlane.xlu0 %328
    %v330 = vsel %vm63, %v45, -inf
    %331 = vmax.xlane.f32.xlu0 %v330
    %v332 = vpop.xlane.xlu0 %331
    %v333 = vsel %vm63, %v46, -inf
    %334 = vmax.xlane.f32.xlu0 %v333
    %v335 = vpop.xlane.xlu0 %334
    %v336 = vsub.f32 %v31, %v290
    %v337 = vsub.f32 %v32, %v293
    %v338 = vsub.f32 %v33, %v296
    %v339 = vsub.f32 %v34, %v299
    %v340 = vsub.f32 %v35, %v302
    %v341 = vsub.f32 %v36, %v305
    %v342 = vsub.f32 %v37, %v308
    %v343 = vsub.f32 %v38, %v311
    %v344 = vsub.f32 %v39, %v314
    %v345 = vsub.f32 %v40, %v317
    %v346 = vsub.f32 %v41, %v320
    %v347 = vsub.f32 %v42, %v323
    %v348 = vsub.f32 %v43, %v326
    %v349 = vsub.f32 %v44, %v329
    %v350 = vsub.f32 %v45, %v332
    %v351 = vsub.f32 %v46, %v335
    %v352 = vmul.f32 %v336, 1.442695
    %v353 = vpow.pop %v352
    %v354 = vmul.f32 %v337, 1.442695
    %v355 = vpow.pop %v354
    %v356 = vmul.f32 %v338, 1.442695
    %v357 = vpow.pop %v356
    %v358 = vmul.f32 %v339, 1.442695
    %v359 = vpow.pop %v358
    %v360 = vmul.f32 %v340, 1.442695
    %v361 = vpow.pop %v360
    %v362 = vmul.f32 %v341, 1.442695
    %v363 = vpow.pop %v362
    %v364 = vmul.f32 %v342, 1.442695
    %v365 = vpow.pop %v364
    %v366 = vmul.f32 %v343, 1.442695
    %v367 = vpow.pop %v366
    %v368 = vmul.f32 %v344, 1.442695
    %v369 = vpow.pop %v368
    %v370 = vmul.f32 %v345, 1.442695
    %v371 = vpow.pop %v370
    %v372 = vmul.f32 %v346, 1.442695
    %v373 = vpow.pop %v372
    %v374 = vmul.f32 %v347, 1.442695
    %v375 = vpow.pop %v374
    %v376 = vmul.f32 %v348, 1.442695
    %v377 = vpow.pop %v376
    %v378 = vmul.f32 %v349, 1.442695
    %v379 = vpow.pop %v378
    %v380 = vmul.f32 %v350, 1.442695
    %v381 = vpow.pop %v380
    %v382 = vmul.f32 %v351, 1.442695
    %v383 = vpow.pop %v382
    %v384 = vsel %vm63, %v353, 0.0
    %385 = vadd.xlane.f32.xlu0 %v384
    %v386 = vpop.xlane.xlu0 %385
    %v387 = vsel %vm63, %v355, 0.0
    %388 = vadd.xlane.f32.xlu0 %v387
    %v389 = vpop.xlane.xlu0 %388
    %v390 = vsel %vm63, %v357, 0.0
    %391 = vadd.xlane.f32.xlu0 %v390
    %v392 = vpop.xlane.xlu0 %391
    %v393 = vsel %vm63, %v359, 0.0
    %394 = vadd.xlane.f32.xlu0 %v393
    %v395 = vpop.xlane.xlu0 %394
    %v396 = vsel %vm63, %v361, 0.0
    %397 = vadd.xlane.f32.xlu0 %v396
    %v398 = vpop.xlane.xlu0 %397
    %v399 = vsel %vm63, %v363, 0.0
    %400 = vadd.xlane.f32.xlu0 %v399
    %v401 = vpop.xlane.xlu0 %400
    %v402 = vsel %vm63, %v365, 0.0
    %403 = vadd.xlane.f32.xlu0 %v402
    %v404 = vpop.xlane.xlu0 %403
    %v405 = vsel %vm63, %v367, 0.0
    %406 = vadd.xlane.f32.xlu0 %v405
    %v407 = vpop.xlane.xlu0 %406
    %v408 = vsel %vm63, %v369, 0.0
    %409 = vadd.xlane.f32.xlu0 %v408
    %v410 = vpop.xlane.xlu0 %409
    %v411 = vsel %vm63, %v371, 0.0
    %412 = vadd.xlane.f32.xlu0 %v411
    %v413 = vpop.xlane.xlu0 %412
    %v414 = vsel %vm63, %v373, 0.0
    %415 = vadd.xlane.f32.xlu0 %v414
    %v416 = vpop.xlane.xlu0 %415
    %v417 = vsel %vm63, %v375, 0.0
    %418 = vadd.xlane.f32.xlu0 %v417
    %v419 = vpop.xlane.xlu0 %418
    %v420 = vsel %vm63, %v377, 0.0
    %421 = vadd.xlane.f32.xlu0 %v420
    %v422 = vpop.xlane.xlu0 %421
    %v423 = vsel %vm63, %v379, 0.0
    %424 = vadd.xlane.f32.xlu0 %v423
    %v425 = vpop.xlane.xlu0 %424
    %v426 = vsel %vm63, %v381, 0.0
    %427 = vadd.xlane.f32.xlu0 %v426
    %v428 = vpop.xlane.xlu0 %427
    %v429 = vsel %vm63, %v383, 0.0
    %430 = vadd.xlane.f32.xlu0 %v429
    %v431 = vpop.xlane.xlu0 %430
    %v432 = vlog2.pop %v386
    %v433 = vmul.f32 %v432, 0.6931472
    %v434 = vlog2.pop %v389
    %v435 = vmul.f32 %v434, 0.6931472
    %v436 = vlog2.pop %v392
    %v437 = vmul.f32 %v436, 0.6931472
    %v438 = vlog2.pop %v395
    %v439 = vmul.f32 %v438, 0.6931472
    %v440 = vlog2.pop %v398
    %v441 = vmul.f32 %v440, 0.6931472
    %v442 = vlog2.pop %v401
    %v443 = vmul.f32 %v442, 0.6931472
    %v444 = vlog2.pop %v404
    %v445 = vmul.f32 %v444, 0.6931472
    %v446 = vlog2.pop %v407
    %v447 = vmul.f32 %v446, 0.6931472
    %v448 = vlog2.pop %v410
    %v449 = vmul.f32 %v448, 0.6931472
    %v450 = vlog2.pop %v413
    %v451 = vmul.f32 %v450, 0.6931472
    %v452 = vlog2.pop %v416
    %v453 = vmul.f32 %v452, 0.6931472
    %v454 = vlog2.pop %v419
    %v455 = vmul.f32 %v454, 0.6931472
    %v456 = vlog2.pop %v422
    %v457 = vmul.f32 %v456, 0.6931472
    %v458 = vlog2.pop %v425
    %v459 = vmul.f32 %v458, 0.6931472
    %v460 = vlog2.pop %v428
    %v461 = vmul.f32 %v460, 0.6931472
    %v462 = vlog2.pop %v431
    %v463 = vmul.f32 %v462, 0.6931472
    %v464 = vrcp.pop %v386
    %v465 = vrcp.pop %v389
    %v466 = vrcp.pop %v392
    %v467 = vrcp.pop %v395
    %v468 = vrcp.pop %v398
    %v469 = vrcp.pop %v401
    %v470 = vrcp.pop %v404
    %v471 = vrcp.pop %v407
    %v472 = vrcp.pop %v410
    %v473 = vrcp.pop %v413
    %v474 = vrcp.pop %v416
    %v475 = vrcp.pop %v419
    %v476 = vrcp.pop %v422
    %v477 = vrcp.pop %v425
    %v478 = vrcp.pop %v428
    %v479 = vrcp.pop %v431
    %v480 = vmul.f32 %v353, %v464
    %v481 = vmul.f32 %v355, %v465
    %v482 = vmul.f32 %v357, %v466
    %v483 = vmul.f32 %v359, %v467
    %v484 = vmul.f32 %v361, %v468
    %v485 = vmul.f32 %v363, %v469
    %v486 = vmul.f32 %v365, %v470
    %v487 = vmul.f32 %v367, %v471
    %v488 = vmul.f32 %v369, %v472
    %v489 = vmul.f32 %v371, %v473
    %v490 = vmul.f32 %v373, %v474
    %v491 = vmul.f32 %v375, %v475
    %v492 = vmul.f32 %v377, %v476
    %v493 = vmul.f32 %v379, %v477
    %v494 = vmul.f32 %v381, %v478
    %v495 = vmul.f32 %v383, %v479
    %v496 = vsub.f32 %v336, %v433
    %v497 = vsub.f32 %v337, %v435
    %v498 = vsub.f32 %v338, %v437
    %v499 = vsub.f32 %v339, %v439
    %v500 = vsub.f32 %v340, %v441
    %v501 = vsub.f32 %v341, %v443
    %v502 = vsub.f32 %v342, %v445
    %v503 = vsub.f32 %v343, %v447
    %v504 = vsub.f32 %v344, %v449
    %v505 = vsub.f32 %v345, %v451
    %v506 = vsub.f32 %v346, %v453
    %v507 = vsub.f32 %v347, %v455
    %v508 = vsub.f32 %v348, %v457
    %v509 = vsub.f32 %v349, %v459
    %v510 = vsub.f32 %v350, %v461
    %v511 = vsub.f32 %v351, %v463
    %v512 = vadd.f32 %v256, %v480
    %v513 = vadd.f32 %v257, %v481
    %v514 = vadd.f32 %v258, %v482
    %v515 = vadd.f32 %v259, %v483
    %v516 = vadd.f32 %v260, %v484
    %v517 = vadd.f32 %v261, %v485
    %v518 = vadd.f32 %v262, %v486
    %v519 = vadd.f32 %v263, %v487
    %v520 = vadd.f32 %v264, %v488
    %v521 = vadd.f32 %v265, %v489
    %v522 = vadd.f32 %v266, %v490
    %v523 = vadd.f32 %v267, %v491
    %v524 = vadd.f32 %v268, %v492
    %v525 = vadd.f32 %v269, %v493
    %v526 = vadd.f32 %v270, %v494
    %v527 = vadd.f32 %v271, %v495
    %v528 = vmul.f32 %v512, 0.5
    %v529 = vmul.f32 %v513, 0.5
    %v530 = vmul.f32 %v514, 0.5
    %v531 = vmul.f32 %v515, 0.5
    %v532 = vmul.f32 %v516, 0.5
    %v533 = vmul.f32 %v517, 0.5
    %v534 = vmul.f32 %v518, 0.5
    %v535 = vmul.f32 %v519, 0.5
    %v536 = vmul.f32 %v520, 0.5
    %v537 = vmul.f32 %v521, 0.5
    %v538 = vmul.f32 %v522, 0.5
    %v539 = vmul.f32 %v523, 0.5
    %v540 = vmul.f32 %v524, 0.5
    %v541 = vmul.f32 %v525, 0.5
    %v542 = vmul.f32 %v526, 0.5
    %v543 = vmul.f32 %v527, 0.5
    %v544 = vmax.f32 %v528, 1e-30
    %v545 = vmax.f32 %v529, 1e-30
    %v546 = vmax.f32 %v530, 1e-30
    %v547 = vmax.f32 %v531, 1e-30
    %v548 = vmax.f32 %v532, 1e-30
    %v549 = vmax.f32 %v533, 1e-30
    %v550 = vmax.f32 %v534, 1e-30
    %v551 = vmax.f32 %v535, 1e-30
    %v552 = vmax.f32 %v536, 1e-30
    %v553 = vmax.f32 %v537, 1e-30
    %v554 = vmax.f32 %v538, 1e-30
    %v555 = vmax.f32 %v539, 1e-30
    %v556 = vmax.f32 %v540, 1e-30
    %v557 = vmax.f32 %v541, 1e-30
    %v558 = vmax.f32 %v542, 1e-30
    %v559 = vmax.f32 %v543, 1e-30
    %v560 = vlog2.pop %v544
    %v561 = vmul.f32 %v560, 0.6931472
    %v562 = vlog2.pop %v545
    %v563 = vmul.f32 %v562, 0.6931472
    %v564 = vlog2.pop %v546
    %v565 = vmul.f32 %v564, 0.6931472
    %v566 = vlog2.pop %v547
    %v567 = vmul.f32 %v566, 0.6931472
    %v568 = vlog2.pop %v548
    %v569 = vmul.f32 %v568, 0.6931472
    %v570 = vlog2.pop %v549
    %v571 = vmul.f32 %v570, 0.6931472
    %v572 = vlog2.pop %v550
    %v573 = vmul.f32 %v572, 0.6931472
    %v574 = vlog2.pop %v551
    %v575 = vmul.f32 %v574, 0.6931472
    %v576 = vlog2.pop %v552
    %v577 = vmul.f32 %v576, 0.6931472
    %v578 = vlog2.pop %v553
    %v579 = vmul.f32 %v578, 0.6931472
    %v580 = vlog2.pop %v554
    %v581 = vmul.f32 %v580, 0.6931472
    %v582 = vlog2.pop %v555
    %v583 = vmul.f32 %v582, 0.6931472
    %v584 = vlog2.pop %v556
    %v585 = vmul.f32 %v584, 0.6931472
    %v586 = vlog2.pop %v557
    %v587 = vmul.f32 %v586, 0.6931472
    %v588 = vlog2.pop %v558
    %v589 = vmul.f32 %v588, 0.6931472
    %v590 = vlog2.pop %v559
    %v591 = vmul.f32 %v590, 0.6931472
    %v592 = vmul.f32 %v561, 2.0
    %v593 = vmul.f32 %v563, 2.0
    %v594 = vmul.f32 %v565, 2.0
    %v595 = vmul.f32 %v567, 2.0
    %v596 = vmul.f32 %v569, 2.0
    %v597 = vmul.f32 %v571, 2.0
    %v598 = vmul.f32 %v573, 2.0
    %v599 = vmul.f32 %v575, 2.0
    %v600 = vmul.f32 %v577, 2.0
    %v601 = vmul.f32 %v579, 2.0
    %v602 = vmul.f32 %v581, 2.0
    %v603 = vmul.f32 %v583, 2.0
    %v604 = vmul.f32 %v585, 2.0
    %v605 = vmul.f32 %v587, 2.0
    %v606 = vmul.f32 %v589, 2.0
    %v607 = vmul.f32 %v591, 2.0
    %v608 = vsub.f32 %v592, %v272
    %v609 = vsub.f32 %v593, %v273
    %v610 = vsub.f32 %v594, %v274
    %v611 = vsub.f32 %v595, %v275
    %v612 = vsub.f32 %v596, %v276
    %v613 = vsub.f32 %v597, %v277
    %v614 = vsub.f32 %v598, %v278
    %v615 = vsub.f32 %v599, %v279
    %v616 = vsub.f32 %v600, %v280
    %v617 = vsub.f32 %v601, %v281
    %v618 = vsub.f32 %v602, %v282
    %v619 = vsub.f32 %v603, %v283
    %v620 = vsub.f32 %v604, %v284
    %v621 = vsub.f32 %v605, %v285
    %v622 = vsub.f32 %v606, %v286
    %v623 = vsub.f32 %v607, %v287
    %v624 = vsub.f32 %v608, %v496
    %v625 = vsub.f32 %v609, %v497
    %v626 = vsub.f32 %v610, %v498
    %v627 = vsub.f32 %v611, %v499
    %v628 = vsub.f32 %v612, %v500
    %v629 = vsub.f32 %v613, %v501
    %v630 = vsub.f32 %v614, %v502
    %v631 = vsub.f32 %v615, %v503
    %v632 = vsub.f32 %v616, %v504
    %v633 = vsub.f32 %v617, %v505
    %v634 = vsub.f32 %v618, %v506
    %v635 = vsub.f32 %v619, %v507
    %v636 = vsub.f32 %v620, %v508
    %v637 = vsub.f32 %v621, %v509
    %v638 = vsub.f32 %v622, %v510
    %v639 = vsub.f32 %v623, %v511
    %v640 = vmul.f32 %v528, %v624
    %v641 = vmul.f32 %v529, %v625
    %v642 = vmul.f32 %v530, %v626
    %v643 = vmul.f32 %v531, %v627
    %v644 = vmul.f32 %v532, %v628
    %v645 = vmul.f32 %v533, %v629
    %v646 = vmul.f32 %v534, %v630
    %v647 = vmul.f32 %v535, %v631
    %v648 = vmul.f32 %v536, %v632
    %v649 = vmul.f32 %v537, %v633
    %v650 = vmul.f32 %v538, %v634
    %v651 = vmul.f32 %v539, %v635
    %v652 = vmul.f32 %v540, %v636
    %v653 = vmul.f32 %v541, %v637
    %v654 = vmul.f32 %v542, %v638
    %v655 = vmul.f32 %v543, %v639
    %v656 = vsel %vm63, %v640, 0.0
    %657 = vadd.xlane.f32.xlu0 %v656
    %v658 = vpop.xlane.xlu0 %657
    %v659 = vsel %vm63, %v641, 0.0
    %660 = vadd.xlane.f32.xlu0 %v659
    %v661 = vpop.xlane.xlu0 %660
    %v662 = vsel %vm63, %v642, 0.0
    %663 = vadd.xlane.f32.xlu0 %v662
    %v664 = vpop.xlane.xlu0 %663
    %v665 = vsel %vm63, %v643, 0.0
    %666 = vadd.xlane.f32.xlu0 %v665
    %v667 = vpop.xlane.xlu0 %666
    %v668 = vsel %vm63, %v644, 0.0
    %669 = vadd.xlane.f32.xlu0 %v668
    %v670 = vpop.xlane.xlu0 %669
    %v671 = vsel %vm63, %v645, 0.0
    %672 = vadd.xlane.f32.xlu0 %v671
    %v673 = vpop.xlane.xlu0 %672
    %v674 = vsel %vm63, %v646, 0.0
    %675 = vadd.xlane.f32.xlu0 %v674
    %v676 = vpop.xlane.xlu0 %675
    %v677 = vsel %vm63, %v647, 0.0
    %678 = vadd.xlane.f32.xlu0 %v677
    %v679 = vpop.xlane.xlu0 %678
    %v680 = vsel %vm63, %v648, 0.0
    %681 = vadd.xlane.f32.xlu0 %v680
    %v682 = vpop.xlane.xlu0 %681
    %v683 = vsel %vm63, %v649, 0.0
    %684 = vadd.xlane.f32.xlu0 %v683
    %v685 = vpop.xlane.xlu0 %684
    %v686 = vsel %vm63, %v650, 0.0
    %687 = vadd.xlane.f32.xlu0 %v686
    %v688 = vpop.xlane.xlu0 %687
    %v689 = vsel %vm63, %v651, 0.0
    %690 = vadd.xlane.f32.xlu0 %v689
    %v691 = vpop.xlane.xlu0 %690
    %v692 = vsel %vm63, %v652, 0.0
    %693 = vadd.xlane.f32.xlu0 %v692
    %v694 = vpop.xlane.xlu0 %693
    %v695 = vsel %vm63, %v653, 0.0
    %696 = vadd.xlane.f32.xlu0 %v695
    %v697 = vpop.xlane.xlu0 %696
    %v698 = vsel %vm63, %v654, 0.0
    %699 = vadd.xlane.f32.xlu0 %v698
    %v700 = vpop.xlane.xlu0 %699
    %v701 = vsel %vm63, %v655, 0.0
    %702 = vadd.xlane.f32.xlu0 %v701
    %v703 = vpop.xlane.xlu0 %702
    %v704 = vmul.f32 %v658, 0.5
    %v705 = vmul.f32 %v661, 0.5
    %v706 = vmul.f32 %v664, 0.5
    %v707 = vmul.f32 %v667, 0.5
    %v708 = vmul.f32 %v670, 0.5
    %v709 = vmul.f32 %v673, 0.5
    %v710 = vmul.f32 %v676, 0.5
    %v711 = vmul.f32 %v679, 0.5
    %v712 = vmul.f32 %v682, 0.5
    %v713 = vmul.f32 %v685, 0.5
    %v714 = vmul.f32 %v688, 0.5
    %v715 = vmul.f32 %v691, 0.5
    %v716 = vmul.f32 %v694, 0.5
    %v717 = vmul.f32 %v697, 0.5
    %v718 = vmul.f32 %v700, 0.5
    %v719 = vmul.f32 %v703, 0.5
    %v720 = vlaneseq
    %v721 = vand.u32 %v720, 127
    %722 = vset.pattern.permute.xlu0 0
    %723 = vperm.xlu0 %722, %v47
    %v724 = vpop.permute.xlu0 %723
    %725 = vset.pattern.permute.xlu0 0
    %726 = vperm.xlu0 %725, %v48
    %v727 = vpop.permute.xlu0 %726
    %728 = vset.pattern.permute.xlu0 0
    %729 = vperm.xlu0 %728, %v49
    %v730 = vpop.permute.xlu0 %729
    %731 = vset.pattern.permute.xlu0 0
    %732 = vperm.xlu0 %731, %v50
    %v733 = vpop.permute.xlu0 %732
    %734 = vset.pattern.permute.xlu0 0
    %735 = vperm.xlu0 %734, %v51
    %v736 = vpop.permute.xlu0 %735
    %737 = vset.pattern.permute.xlu0 0
    %738 = vperm.xlu0 %737, %v52
    %v739 = vpop.permute.xlu0 %738
    %740 = vset.pattern.permute.xlu0 0
    %741 = vperm.xlu0 %740, %v53
    %v742 = vpop.permute.xlu0 %741
    %743 = vset.pattern.permute.xlu0 0
    %744 = vperm.xlu0 %743, %v54
    %v745 = vpop.permute.xlu0 %744
    %746 = vset.pattern.permute.xlu0 0
    %747 = vperm.xlu0 %746, %v55
    %v748 = vpop.permute.xlu0 %747
    %749 = vset.pattern.permute.xlu0 0
    %750 = vperm.xlu0 %749, %v56
    %v751 = vpop.permute.xlu0 %750
    %752 = vset.pattern.permute.xlu0 0
    %753 = vperm.xlu0 %752, %v57
    %v754 = vpop.permute.xlu0 %753
    %755 = vset.pattern.permute.xlu0 0
    %756 = vperm.xlu0 %755, %v58
    %v757 = vpop.permute.xlu0 %756
    %758 = vset.pattern.permute.xlu0 0
    %759 = vperm.xlu0 %758, %v59
    %v760 = vpop.permute.xlu0 %759
    %761 = vset.pattern.permute.xlu0 0
    %762 = vperm.xlu0 %761, %v60
    %v763 = vpop.permute.xlu0 %762
    %764 = vset.pattern.permute.xlu0 0
    %765 = vperm.xlu0 %764, %v61
    %v766 = vpop.permute.xlu0 %765
    %767 = vset.pattern.permute.xlu0 0
    %768 = vperm.xlu0 %767, %v62
    %v769 = vpop.permute.xlu0 %768
    %vm770 = vcmp.eq.s32.totalorder %v721, %v724
    %vm771 = vcmp.eq.s32.totalorder %v721, %v727
    %vm772 = vcmp.eq.s32.totalorder %v721, %v730
    %vm773 = vcmp.eq.s32.totalorder %v721, %v733
    %vm774 = vcmp.eq.s32.totalorder %v721, %v736
    %vm775 = vcmp.eq.s32.totalorder %v721, %v739
    %vm776 = vcmp.eq.s32.totalorder %v721, %v742
    %vm777 = vcmp.eq.s32.totalorder %v721, %v745
    %vm778 = vcmp.eq.s32.totalorder %v721, %v748
    %vm779 = vcmp.eq.s32.totalorder %v721, %v751
    %vm780 = vcmp.eq.s32.totalorder %v721, %v754
    %vm781 = vcmp.eq.s32.totalorder %v721, %v757
    %vm782 = vcmp.eq.s32.totalorder %v721, %v760
    %vm783 = vcmp.eq.s32.totalorder %v721, %v763
    %vm784 = vcmp.eq.s32.totalorder %v721, %v766
    %vm785 = vcmp.eq.s32.totalorder %v721, %v769
    %v786 = vsel %vm770, %v15, 0.0
    %v787 = vsel %vm771, %v16, 0.0
    %v788 = vsel %vm772, %v17, 0.0
    %v789 = vsel %vm773, %v18, 0.0
    %v790 = vsel %vm774, %v19, 0.0
    %v791 = vsel %vm775, %v20, 0.0
    %v792 = vsel %vm776, %v21, 0.0
    %v793 = vsel %vm777, %v22, 0.0
    %v794 = vsel %vm778, %v23, 0.0
    %v795 = vsel %vm779, %v24, 0.0
    %v796 = vsel %vm780, %v25, 0.0
    %v797 = vsel %vm781, %v26, 0.0
    %v798 = vsel %vm782, %v27, 0.0
    %v799 = vsel %vm783, %v28, 0.0
    %v800 = vsel %vm784, %v29, 0.0
    %v801 = vsel %vm785, %v30, 0.0
    %v802 = vsel %vm63, %v786, 0.0
    %803 = vadd.xlane.f32.xlu0 %v802
    %v804 = vpop.xlane.xlu0 %803
    %v805 = vsel %vm63, %v787, 0.0
    %806 = vadd.xlane.f32.xlu0 %v805
    %v807 = vpop.xlane.xlu0 %806
    %v808 = vsel %vm63, %v788, 0.0
    %809 = vadd.xlane.f32.xlu0 %v808
    %v810 = vpop.xlane.xlu0 %809
    %v811 = vsel %vm63, %v789, 0.0
    %812 = vadd.xlane.f32.xlu0 %v811
    %v813 = vpop.xlane.xlu0 %812
    %v814 = vsel %vm63, %v790, 0.0
    %815 = vadd.xlane.f32.xlu0 %v814
    %v816 = vpop.xlane.xlu0 %815
    %v817 = vsel %vm63, %v791, 0.0
    %818 = vadd.xlane.f32.xlu0 %v817
    %v819 = vpop.xlane.xlu0 %818
    %v820 = vsel %vm63, %v792, 0.0
    %821 = vadd.xlane.f32.xlu0 %v820
    %v822 = vpop.xlane.xlu0 %821
    %v823 = vsel %vm63, %v793, 0.0
    %824 = vadd.xlane.f32.xlu0 %v823
    %v825 = vpop.xlane.xlu0 %824
    %v826 = vsel %vm63, %v794, 0.0
    %827 = vadd.xlane.f32.xlu0 %v826
    %v828 = vpop.xlane.xlu0 %827
    %v829 = vsel %vm63, %v795, 0.0
    %830 = vadd.xlane.f32.xlu0 %v829
    %v831 = vpop.xlane.xlu0 %830
    %v832 = vsel %vm63, %v796, 0.0
    %833 = vadd.xlane.f32.xlu0 %v832
    %v834 = vpop.xlane.xlu0 %833
    %v835 = vsel %vm63, %v797, 0.0
    %836 = vadd.xlane.f32.xlu0 %v835
    %v837 = vpop.xlane.xlu0 %836
    %v838 = vsel %vm63, %v798, 0.0
    %839 = vadd.xlane.f32.xlu0 %v838
    %v840 = vpop.xlane.xlu0 %839
    %v841 = vsel %vm63, %v799, 0.0
    %842 = vadd.xlane.f32.xlu0 %v841
    %v843 = vpop.xlane.xlu0 %842
    %v844 = vsel %vm63, %v800, 0.0
    %845 = vadd.xlane.f32.xlu0 %v844
    %v846 = vpop.xlane.xlu0 %845
    %v847 = vsel %vm63, %v801, 0.0
    %848 = vadd.xlane.f32.xlu0 %v847
    %v849 = vpop.xlane.xlu0 %848
    %v850 = vsel %vm770, %v31, 0.0
    %v851 = vsel %vm771, %v32, 0.0
    %v852 = vsel %vm772, %v33, 0.0
    %v853 = vsel %vm773, %v34, 0.0
    %v854 = vsel %vm774, %v35, 0.0
    %v855 = vsel %vm775, %v36, 0.0
    %v856 = vsel %vm776, %v37, 0.0
    %v857 = vsel %vm777, %v38, 0.0
    %v858 = vsel %vm778, %v39, 0.0
    %v859 = vsel %vm779, %v40, 0.0
    %v860 = vsel %vm780, %v41, 0.0
    %v861 = vsel %vm781, %v42, 0.0
    %v862 = vsel %vm782, %v43, 0.0
    %v863 = vsel %vm783, %v44, 0.0
    %v864 = vsel %vm784, %v45, 0.0
    %v865 = vsel %vm785, %v46, 0.0
    %v866 = vsel %vm63, %v850, 0.0
    %867 = vadd.xlane.f32.xlu0 %v866
    %v868 = vpop.xlane.xlu0 %867
    %v869 = vsel %vm63, %v851, 0.0
    %870 = vadd.xlane.f32.xlu0 %v869
    %v871 = vpop.xlane.xlu0 %870
    %v872 = vsel %vm63, %v852, 0.0
    %873 = vadd.xlane.f32.xlu0 %v872
    %v874 = vpop.xlane.xlu0 %873
    %v875 = vsel %vm63, %v853, 0.0
    %876 = vadd.xlane.f32.xlu0 %v875
    %v877 = vpop.xlane.xlu0 %876
    %v878 = vsel %vm63, %v854, 0.0
    %879 = vadd.xlane.f32.xlu0 %v878
    %v880 = vpop.xlane.xlu0 %879
    %v881 = vsel %vm63, %v855, 0.0
    %882 = vadd.xlane.f32.xlu0 %v881
    %v883 = vpop.xlane.xlu0 %882
    %v884 = vsel %vm63, %v856, 0.0
    %885 = vadd.xlane.f32.xlu0 %v884
    %v886 = vpop.xlane.xlu0 %885
    %v887 = vsel %vm63, %v857, 0.0
    %888 = vadd.xlane.f32.xlu0 %v887
    %v889 = vpop.xlane.xlu0 %888
    %v890 = vsel %vm63, %v858, 0.0
    %891 = vadd.xlane.f32.xlu0 %v890
    %v892 = vpop.xlane.xlu0 %891
    %v893 = vsel %vm63, %v859, 0.0
    %894 = vadd.xlane.f32.xlu0 %v893
    %v895 = vpop.xlane.xlu0 %894
    %v896 = vsel %vm63, %v860, 0.0
    %897 = vadd.xlane.f32.xlu0 %v896
    %v898 = vpop.xlane.xlu0 %897
    %v899 = vsel %vm63, %v861, 0.0
    %900 = vadd.xlane.f32.xlu0 %v899
    %v901 = vpop.xlane.xlu0 %900
    %v902 = vsel %vm63, %v862, 0.0
    %903 = vadd.xlane.f32.xlu0 %v902
    %v904 = vpop.xlane.xlu0 %903
    %v905 = vsel %vm63, %v863, 0.0
    %906 = vadd.xlane.f32.xlu0 %v905
    %v907 = vpop.xlane.xlu0 %906
    %v908 = vsel %vm63, %v864, 0.0
    %909 = vadd.xlane.f32.xlu0 %v908
    %v910 = vpop.xlane.xlu0 %909
    %v911 = vsel %vm63, %v865, 0.0
    %912 = vadd.xlane.f32.xlu0 %v911
    %v913 = vpop.xlane.xlu0 %912
    %v914 = vadd.f32 %v66, %v209
    %v915 = vadd.f32 %v69, %v211
    %v916 = vadd.f32 %v72, %v213
    %v917 = vadd.f32 %v75, %v215
    %v918 = vadd.f32 %v78, %v217
    %v919 = vadd.f32 %v81, %v219
    %v920 = vadd.f32 %v84, %v221
    %v921 = vadd.f32 %v87, %v223
    %v922 = vadd.f32 %v90, %v225
    %v923 = vadd.f32 %v93, %v227
    %v924 = vadd.f32 %v96, %v229
    %v925 = vadd.f32 %v99, %v231
    %v926 = vadd.f32 %v102, %v233
    %v927 = vadd.f32 %v105, %v235
    %v928 = vadd.f32 %v108, %v237
    %v929 = vadd.f32 %v111, %v239
    %v930 = vsub.f32 %v914, %v804
    %v931 = vsub.f32 %v915, %v807
    %v932 = vsub.f32 %v916, %v810
    %v933 = vsub.f32 %v917, %v813
    %v934 = vsub.f32 %v918, %v816
    %v935 = vsub.f32 %v919, %v819
    %v936 = vsub.f32 %v920, %v822
    %v937 = vsub.f32 %v921, %v825
    %v938 = vsub.f32 %v922, %v828
    %v939 = vsub.f32 %v923, %v831
    %v940 = vsub.f32 %v924, %v834
    %v941 = vsub.f32 %v925, %v837
    %v942 = vsub.f32 %v926, %v840
    %v943 = vsub.f32 %v927, %v843
    %v944 = vsub.f32 %v928, %v846
    %v945 = vsub.f32 %v929, %v849
    %v946 = vadd.f32 %v290, %v433
    %v947 = vadd.f32 %v293, %v435
    %v948 = vadd.f32 %v296, %v437
    %v949 = vadd.f32 %v299, %v439
    %v950 = vadd.f32 %v302, %v441
    %v951 = vadd.f32 %v305, %v443
    %v952 = vadd.f32 %v308, %v445
    %v953 = vadd.f32 %v311, %v447
    %v954 = vadd.f32 %v314, %v449
    %v955 = vadd.f32 %v317, %v451
    %v956 = vadd.f32 %v320, %v453
    %v957 = vadd.f32 %v323, %v455
    %v958 = vadd.f32 %v326, %v457
    %v959 = vadd.f32 %v329, %v459
    %v960 = vadd.f32 %v332, %v461
    %v961 = vadd.f32 %v335, %v463
    %v962 = vsub.f32 %v946, %v868
    %v963 = vsub.f32 %v947, %v871
    %v964 = vsub.f32 %v948, %v874
    %v965 = vsub.f32 %v949, %v877
    %v966 = vsub.f32 %v950, %v880
    %v967 = vsub.f32 %v951, %v883
    %v968 = vsub.f32 %v952, %v886
    %v969 = vsub.f32 %v953, %v889
    %v970 = vsub.f32 %v954, %v892
    %v971 = vsub.f32 %v955, %v895
    %v972 = vsub.f32 %v956, %v898
    %v973 = vsub.f32 %v957, %v901
    %v974 = vsub.f32 %v958, %v904
    %v975 = vsub.f32 %v959, %v907
    %v976 = vsub.f32 %v960, %v910
    %v977 = vsub.f32 %v961, %v913
    %vm978 = vcmp.eq.s32.totalorder %v721, 0
    %vm979 = vcmp.eq.s32.totalorder %v721, 1
    %vm980 = vcmp.eq.s32.totalorder %v721, 2
    %v981 = vsel %vm980, %v962, 0.0
    %v982 = vsel %vm980, %v963, 0.0
    %v983 = vsel %vm980, %v964, 0.0
    %v984 = vsel %vm980, %v965, 0.0
    %v985 = vsel %vm980, %v966, 0.0
    %v986 = vsel %vm980, %v967, 0.0
    %v987 = vsel %vm980, %v968, 0.0
    %v988 = vsel %vm980, %v969, 0.0
    %v989 = vsel %vm980, %v970, 0.0
    %v990 = vsel %vm980, %v971, 0.0
    %v991 = vsel %vm980, %v972, 0.0
    %v992 = vsel %vm980, %v973, 0.0
    %v993 = vsel %vm980, %v974, 0.0
    %v994 = vsel %vm980, %v975, 0.0
    %v995 = vsel %vm980, %v976, 0.0
    %v996 = vsel %vm980, %v977, 0.0
    %v997 = vsel %vm979, %v930, %v981
    %v998 = vsel %vm979, %v931, %v982
    %v999 = vsel %vm979, %v932, %v983
    %v1000 = vsel %vm979, %v933, %v984
    %v1001 = vsel %vm979, %v934, %v985
    %v1002 = vsel %vm979, %v935, %v986
    %v1003 = vsel %vm979, %v936, %v987
    %v1004 = vsel %vm979, %v937, %v988
    %v1005 = vsel %vm979, %v938, %v989
    %v1006 = vsel %vm979, %v939, %v990
    %v1007 = vsel %vm979, %v940, %v991
    %v1008 = vsel %vm979, %v941, %v992
    %v1009 = vsel %vm979, %v942, %v993
    %v1010 = vsel %vm979, %v943, %v994
    %v1011 = vsel %vm979, %v944, %v995
    %v1012 = vsel %vm979, %v945, %v996
    %v1013 = vsel %vm978, %v704, %v997
    %v1014 = vsel %vm978, %v705, %v998
    %v1015 = vsel %vm978, %v706, %v999
    %v1016 = vsel %vm978, %v707, %v1000
    %v1017 = vsel %vm978, %v708, %v1001
    %v1018 = vsel %vm978, %v709, %v1002
    %v1019 = vsel %vm978, %v710, %v1003
    %v1020 = vsel %vm978, %v711, %v1004
    %v1021 = vsel %vm978, %v712, %v1005
    %v1022 = vsel %vm978, %v713, %v1006
    %v1023 = vsel %vm978, %v714, %v1007
    %v1024 = vsel %vm978, %v715, %v1008
    %v1025 = vsel %vm978, %v716, %v1009
    %v1026 = vsel %vm978, %v717, %v1010
    %v1027 = vsel %vm978, %v718, %v1011
    %v1028 = vsel %vm978, %v719, %v1012
    %1029 = vxpose.xlu0.b32.start [1/16] %v1013, 128
    %1030 = vxpose.xlu0.b32.cont [2/16] %v1014, 128
    %1031 = vxpose.xlu0.b32.cont [3/16] %v1015, 128
    %1032 = vxpose.xlu0.b32.cont [4/16] %v1016, 128
    %1033 = vxpose.xlu0.b32.cont [5/16] %v1017, 128
    %1034 = vxpose.xlu0.b32.cont [6/16] %v1018, 128
    %1035 = vxpose.xlu0.b32.cont [7/16] %v1019, 128
    %1036 = vxpose.xlu0.b32.cont [8/16] %v1020, 128
    %1037 = vxpose.xlu0.b32.cont [9/16] %v1021, 128
    %1038 = vxpose.xlu0.b32.cont [10/16] %v1022, 128
    %1039 = vxpose.xlu0.b32.cont [11/16] %v1023, 128
    %1040 = vxpose.xlu0.b32.cont [12/16] %v1024, 128
    %1041 = vxpose.xlu0.b32.cont [13/16] %v1025, 128
    %1042 = vxpose.xlu0.b32.cont [14/16] %v1026, 128
    %1043 = vxpose.xlu0.b32.cont [15/16] %v1027, 128
    %1044 = vxpose.xlu0.b32.end [16/16] %v1028, 128
    %v1045 = vpop.trf.xlu0
    %v1046 = vpop.trf.xlu0
    %v1047 = vpop.trf.xlu0
    %v1048 = vpop.trf.xlu0
    %v1049 = vpop.trf.xlu0
    %v1050 = vpop.trf.xlu0
    %v1051 = vpop.trf.xlu0
    %v1052 = vpop.trf.xlu0
    %v1053 = vpop.trf.xlu0
    %v1054 = vpop.trf.xlu0
    %v1055 = vpop.trf.xlu0
    %v1056 = vpop.trf.xlu0
    %v1057 = vpop.trf.xlu0
    %v1058 = vpop.trf.xlu0
    %v1059 = vpop.trf.xlu0
    %v1060 = vpop.trf.xlu0
    %1061 = vst [vmem:[#allocation2] sm:$0x7] %v1045
    // Predicated region
    $region14: #{tpu_custom_call.1} parent=1 // pred_check
      _
    $region15: #{tpu_custom_call.1} parent=1 // pred_check_branch
      %1063 = sbr.rel (0) target = $region17
    $region16: #{tpu_custom_call.1} parent=1 // pred_region
      %s1065 = ssub.s32 64, 64
      %1066 = vsyncadd [#allocation3], %s1065
      %s1068 = sshll.u32 [#allocation2], 4
      %s1069 = int_to_ptr.vmem [resolvable:$true] %s1068
      %1071 = dma.vmem_to_hbm [thread:$0]  %s1069, 64, %s3, [#allocation3]
    $region17: #{tpu_custom_call.1} parent=1 // pred_fallthru
      _
    // Predicated region
    $region18: #{tpu_custom_call.1} parent=1 // pred_check
      _
    $region19: #{tpu_custom_call.1} parent=1 // pred_check_branch
      %1073 = sbr.rel (0) target = $region21
    $region20: #{tpu_custom_call.1} parent=1 // pred_region
      %1074 = dma.done [#allocation3], 64
    $region21: #{tpu_custom_call.1} parent=1 // pred_fallthru
      _
    %1075 = vsyncpa [#allocation3], 1

</llo_original>
